<compile_context>
chip_gen: v7x
topology: tpu7x:2x2x1
jax: 0.10.0
libtpu: 0.0.40
codegen_flags: <defaults>
</compile_context>

<pallas_src>
import jax
import jax.numpy as jnp
from jax.experimental import pallas as pl
from jax.experimental.pallas import tpu as pltpu


def _round_up(x, m):
    return ((x + m - 1) // m) * m


# -----------------------------------------------------------------------------
# Kernel: one fused affine map  y = fea @ Wf + z @ Wz + b   (f32 accumulation).
# Wf / Wz are the fea-rows / z-rows of (W2 @ W1)^T, so the concat never exists and
# both original Linear layers collapse into a single GEMM.
# -----------------------------------------------------------------------------
def _p_yxz_kernel(fea_ref, z_ref, wf_ref, wz_ref, b_ref, o_ref):
    acc = jnp.dot(fea_ref[...].astype(wf_ref.dtype), wf_ref[...],
                  preferred_element_type=jnp.float32)
    acc = acc + jnp.dot(z_ref[...].astype(wz_ref.dtype), wz_ref[...],
                        preferred_element_type=jnp.float32)
    o_ref[...] = acc + b_ref[...]


def _pick_tile_m(B):
    """Batch tile: multiple of 16; >=2 grid steps when B allows (v7x megacore); cap 512."""
    if B <= 16:
        return 16
    return min(512, _round_up((B + 1) // 2, 16))


# -----------------------------------------------------------------------------
# One-time parameter preparation + jitted forward factory
# -----------------------------------------------------------------------------
def make_p_yxz(params, latent_size, num_classes, H, compute_dtype=jnp.bfloat16):
    """params: PyTorch-layout dict  w1:(H, H+L)  b1:(H,)  w2:(C, H)  b2:(C,)."""
    L, C = latent_size, num_classes

    # One-time algebraic fold (valid because there is no nonlinearity between layers):
    #   y = ([fea, z] @ W1^T + b1) @ W2^T + b2
    #     = [fea, z] @ (W2 @ W1)^T + (W2 @ b1 + b2)
    w2f = params["w2"].astype(jnp.float32)
    w1f = params["w1"].astype(jnp.float32)
    w_eff_t = (w2f @ w1f).T                                              # (H+L, C), f32 fold
    b_eff = w2f @ params["b1"].astype(jnp.float32) + params["b2"].astype(jnp.float32)

    # Concat order is [fea, z]: first H rows multiply fea, last L rows multiply z.
    wf = w_eff_t[:H, :].astype(compute_dtype)        # (H, C)
    wz = w_eff_t[H:, :].astype(compute_dtype)        # (L, C)
    b = b_eff.reshape(1, C).astype(jnp.float32)      # (1, C)

    def forward(fea, z):
        B = fea.shape[0]
        if B == 0:
            return jnp.zeros((0, C), jnp.float32)

        TM = _pick_tile_m(B)
        grid_m = pl.cdiv(B, TM)   # partial last tile handled by Pallas boundary masking

        # Tight VMEM estimate (VMEM tiles are lane-padded to 128; 2 pipeline buffers
        # per input/output).  Capped at 32 MiB -> safe on v7x (64 MiB) and v5e/v6e.
        per_step = (
            2 * TM * (_round_up(H, 128) + _round_up(L, 128)) * 4   # fea/z f32 tiles
            + 2 * TM * _round_up(C, 128) * 4                       # output f32 tile
            + 2 * (H + L + 8) * 128 * 4                            # resident weights + bias
        )
        vmem_limit = int(min(32 << 20, max(4 << 20, 2 * per_step)))

        cost = pl.CostEstimate(
            flops=2 * B * (H + L) * C,
            transcendentals=0,
            bytes_accessed=(B * (H + L) + B * C) * 4 + (H + L) * C * 2 + C * 4,
        )

        return pl.pallas_call(
            _p_yxz_kernel,
            out_shape=jax.ShapeDtypeStruct((B, C), jnp.float32),
            grid=(grid_m,),
            in_specs=[
                pl.BlockSpec((TM, H), lambda i: (i, 0)),   # fea tile, unpadded f32
                pl.BlockSpec((TM, L), lambda i: (i, 0)),   # z tile, unpadded f32
                pl.BlockSpec((H, C), lambda i: (0, 0)),    # folded W (fea rows), resident
                pl.BlockSpec((L, C), lambda i: (0, 0)),    # folded W (z rows), resident
                pl.BlockSpec((1, C), lambda i: (0, 0)),    # folded bias
            ],
            out_specs=pl.BlockSpec((TM, C), lambda i: (i, 0)),
            compiler_params=pltpu.CompilerParams(
                dimension_semantics=("parallel",),
                vmem_limit_bytes=vmem_limit,
            ),
            cost_estimate=cost,
        )(fea, z, wf, wz, b)

    return jax.jit(forward)


# -----------------------------------------------------------------------------
# Pure-JAX reference (f32, unfused) for a correctness check
# -----------------------------------------------------------------------------
def p_yxz_ref(params, fea, z):
    h = jnp.concatenate([fea, z], axis=1) @ params["w1"].T + params["b1"]
    return h @ params["w2"].T + params["b2"]


# -----------------------------------------------------------------------------
# PyTorch-default-style init (uniform +-1/sqrt(fan_in))
# -----------------------------------------------------------------------------
def init_params(key, latent_size, num_classes, H):
    k1, k2, k3, k4 = jax.random.split(key, 4)
    s1 = 1.0 / ((latent_size + H) ** 0.5)
    s2 = 1.0 / (H ** 0.5)
    return {
        "w1": jax.random.uniform(k1, (H, latent_size + H), jnp.float32, -s1, s1),
        "b1": jax.random.uniform(k2, (H,), jnp.float32, -s1, s1),
        "w2": jax.random.uniform(k3, (num_classes, H), jnp.float32, -s2, s2),
        "b2": jax.random.uniform(k4, (num_classes,), jnp.float32, -s2, s2),
    }


if __name__ == "__main__":
    LATENT, NUM_CLASSES, HIDDEN = 16, 10, 32
    B = 2

    key = jax.random.PRNGKey(0)
    kfea, kz, kparams = jax.random.split(key, 3)

    fea = jax.random.normal(kfea, (B, HIDDEN), jnp.float32)   # fea: (B, H)
    z = jax.random.normal(kz, (B, LATENT), jnp.float32)       # z:   (B, latent_size)

    params = init_params(kparams, LATENT, NUM_CLASSES, HIDDEN)

    fwd = make_p_yxz(params, LATENT, NUM_CLASSES, HIDDEN)     # one-time weight fold/prep
    y_tild = jax.block_until_ready(fwd(fea, z))

    assert y_tild.shape == (B, NUM_CLASSES)
    assert bool(jnp.all(jnp.isfinite(y_tild)))

    # Correctness vs f32 reference (loose tolerance: folded weights + GEMM operands
    # are bf16, accumulation is f32).
    ref = p_yxz_ref(params, fea, z)
    assert bool(jnp.allclose(y_tild, ref, rtol=5e-2, atol=1e-1)), (
        float(jnp.max(jnp.abs(y_tild - ref)))
    )

    print("KERNEL_OK")
</pallas_src>

<mosaic_0001>
module attributes {stable_mosaic.version = 11 : i64} {
  func.func @_p_yxz_kernel(%arg0: i32, %arg1: memref<16x32xf32, #tpu.memory_space<vmem>>, %arg2: memref<16x16xf32, #tpu.memory_space<vmem>>, %arg3: memref<32x10xbf16, #tpu.memory_space<vmem>>, %arg4: memref<16x10xbf16, #tpu.memory_space<vmem>>, %arg5: memref<1x10xf32, #tpu.memory_space<vmem>>, %arg6: memref<16x10xf32, #tpu.memory_space<vmem>>) attributes {dimension_semantics = [#tpu.dimension_semantics<parallel>], iteration_bounds = array<i64: 1>, scalar_prefetch = 0 : i64, scratch_operands = 0 : i64, tpu.core_type = #tpu.core_type<tc>, window_params = [{transform_indices = @transform_0, window_bounds = array<i64: 16, 32>}, {transform_indices = @transform_1, window_bounds = array<i64: 16, 16>}, {pipeline_mode = #tpu.pipeline_mode<synchronous>, transform_indices = @transform_2, window_bounds = array<i64: 32, 10>}, {pipeline_mode = #tpu.pipeline_mode<synchronous>, transform_indices = @transform_3, window_bounds = array<i64: 16, 10>}, {pipeline_mode = #tpu.pipeline_mode<synchronous>, transform_indices = @transform_4, window_bounds = array<i64: 1, 10>}, {transform_indices = @transform_5, window_bounds = array<i64: 16, 10>}]} {
    %c0 = arith.constant 0 : index
    %c0_0 = arith.constant 0 : index
    %0 = vector.load %arg1[%c0, %c0_0] : memref<16x32xf32, #tpu.memory_space<vmem>>, vector<16x32xf32>
    %1 = arith.truncf %0 : vector<16x32xf32> to vector<16x32xbf16>
    %c0_1 = arith.constant 0 : index
    %c0_2 = arith.constant 0 : index
    %2 = vector.load %arg3[%c0_1, %c0_2] : memref<32x10xbf16, #tpu.memory_space<vmem>>, vector<32x10xbf16>
    %cst = arith.constant dense<0.000000e+00> : vector<16x10xf32>
    %3 = tpu.matmul %1, %2, %cst {dimension_numbers = #tpu.dot_dimension_numbers<[1], [0], [0], [1], [0, 0, 1, 1], [], []>} : vector<16x32xbf16>, vector<32x10xbf16>, vector<16x10xf32> -> vector<16x10xf32>
    %c0_3 = arith.constant 0 : index
    %c0_4 = arith.constant 0 : index
    %4 = vector.load %arg2[%c0_3, %c0_4] : memref<16x16xf32, #tpu.memory_space<vmem>>, vector<16x16xf32>
    %5 = arith.truncf %4 : vector<16x16xf32> to vector<16x16xbf16>
    %c0_5 = arith.constant 0 : index
    %c0_6 = arith.constant 0 : index
    %6 = vector.load %arg4[%c0_5, %c0_6] : memref<16x10xbf16, #tpu.memory_space<vmem>>, vector<16x10xbf16>
    %cst_7 = arith.constant dense<0.000000e+00> : vector<16x10xf32>
    %7 = tpu.matmul %5, %6, %cst_7 {dimension_numbers = #tpu.dot_dimension_numbers<[1], [0], [0], [1], [0, 0, 1, 1], [], []>} : vector<16x16xbf16>, vector<16x10xbf16>, vector<16x10xf32> -> vector<16x10xf32>
    %8 = arith.addf %3, %7 : vector<16x10xf32>
    %c0_8 = arith.constant 0 : index
    %c0_9 = arith.constant 0 : index
    %9 = vector.load %arg5[%c0_8, %c0_9] : memref<1x10xf32, #tpu.memory_space<vmem>>, vector<1x10xf32>
    %10 = vector.broadcast %9 : vector<1x10xf32> to vector<16x10xf32>
    %11 = arith.addf %8, %10 : vector<16x10xf32>
    %c0_10 = arith.constant 0 : index
    %c0_11 = arith.constant 0 : index
    %12 = vector.load %arg6[%c0_10, %c0_11] : memref<16x10xf32, #tpu.memory_space<vmem>>, vector<16x10xf32>
    tpu.vector_store %arg6[%c0_10, %c0_11], %11 {strides = array<i32>} : memref<16x10xf32, #tpu.memory_space<vmem>>, vector<16x10xf32>,
    return
  }
  func.func @transform_0(%arg0: i32) -> (i32, i32) {
    %c0_i32 = arith.constant 0 : i32
    %c0_i32_0 = arith.constant 0 : i32
    return %arg0, %c0_i32 : i32, i32
  }
  func.func @transform_1(%arg0: i32) -> (i32, i32) {
    %c0_i32 = arith.constant 0 : i32
    %c0_i32_0 = arith.constant 0 : i32
    return %arg0, %c0_i32 : i32, i32
  }
  func.func @transform_2(%arg0: i32) -> (i32, i32) {
    %c0_i32 = arith.constant 0 : i32
    %c0_i32_0 = arith.constant 0 : i32
    %c0_i32_1 = arith.constant 0 : i32
    return %c0_i32, %c0_i32_0 : i32, i32
  }
  func.func @transform_3(%arg0: i32) -> (i32, i32) {
    %c0_i32 = arith.constant 0 : i32
    %c0_i32_0 = arith.constant 0 : i32
    %c0_i32_1 = arith.constant 0 : i32
    return %c0_i32, %c0_i32_0 : i32, i32
  }
  func.func @transform_4(%arg0: i32) -> (i32, i32) {
    %c0_i32 = arith.constant 0 : i32
    %c0_i32_0 = arith.constant 0 : i32
    %c0_i32_1 = arith.constant 0 : i32
    return %c0_i32, %c0_i32_0 : i32, i32
  }
  func.func @transform_5(%arg0: i32) -> (i32, i32) {
    %c0_i32 = arith.constant 0 : i32
    %c0_i32_0 = arith.constant 0 : i32
    return %arg0, %c0_i32 : i32, i32
  }
}

</mosaic_0001>

<llo_original>
// kernel: forward.1
$region0: #{forward.1}
  #allocation0 [shape = 'u32[]', space=smem, size = 0x4, offset = 0x4, fixed_abs, tag = 'smem constant byte address 0x4 - core index']
  #allocation1 [shape = 'u32[144,128]{1,0:T(1,128)}', space=vmem, size = 0x12000, scoped, tag = 'internal scratch']
  %s0 = inlined_call_operand.vmem [shape: f32[2,32], index: 0, kind: input, shape index: {}]
  %s1 = inlined_call_operand.hbm [shape: f32[2,16], index: 1, kind: input, shape index: {}]
  %s2 = inlined_call_operand.vmem [shape: bf16[32,10], index: 2, kind: input, shape index: {}]
  %s3 = inlined_call_operand.hbm [shape: bf16[16,10], index: 3, kind: input, shape index: {}]
  %s4 = inlined_call_operand.hbm [shape: f32[1,10], index: 4, kind: input, shape index: {}]
  %s5 = inlined_call_operand.hbm [shape: f32[2,10], index: 5, kind: output, shape index: {}]
  %s6 = sld [smem:[#allocation0]]
  $region42: #{forward.1} parent=0
    _
  %s8 = ssub.s32 1, %s6
  %s9 = scalar_select 0, %s8, %s6
  $region1: #{forward.1} parent=0
    #allocation2 [shape = 'u8[8192]{0}', space=vmem, size = 0x2000, scoped, tag = 'input window, operand 1, single buffered']
    #allocation3 [shape = 's32[1]{0}', space=sflag, size = 0x4, scoped, tag = 'scoped memory for forward.1']
    #allocation4 [shape = 's32[1]{0}', space=sflag, size = 0x4, scoped, tag = 'scoped memory for forward.1']
    #allocation5 [shape = 'u8[4096]{0}', space=vmem, size = 0x1000, scoped, tag = 'input window, operand 3, single buffered']
    #allocation6 [shape = 's32[1]{0}', space=sflag, size = 0x4, scoped, tag = 'scoped memory for forward.1']
    #allocation7 [shape = 'u8[512]{0}', space=vmem, size = 0x400, scoped, tag = 'input window, operand 4, single buffered']
    #allocation8 [shape = 'u8[8192]{0}', space=vmem, size = 0x2000, scoped, tag = 'output window, operand 0, single buffered']
    %10 = vsyncpa [#allocation3], 0
    %11 = vsyncpa [#allocation6], 0
    %12 = vsyncpa [#allocation4], 0
    // Predicated region
    $region2: #{forward.1} parent=1 // pred_check
      _
    $region3: #{forward.1} parent=1 // pred_check_branch
      %14 = sbr.rel (0) target = $region5
    $region4: #{forward.1} parent=1 // pred_region
      _
    $region5: #{forward.1} parent=1 // pred_fallthru
      _
    // Predicated region
    $region6: #{forward.1} parent=1 // pred_check
      _
    $region7: #{forward.1} parent=1 // pred_check_branch
      %16 = sbr.rel (0) target = $region9
    $region8: #{forward.1} parent=1 // pred_region
      %s18 = ssub.s32 256, 32
      %19 = vsyncadd [#allocation3], %s18
      %s20 = sshll.u32 [#allocation2], 4
      %s21 = int_to_ptr.vmem [resolvable:$true] %s20
      %26 = dma.hbm_to_vmem [thread:$0]  %s1, 32, %s21, [#allocation3], 32, 32, 2
    $region9: #{forward.1} parent=1 // pred_fallthru
      _
    // Predicated region
    $region10: #{forward.1} parent=1 // pred_check
      _
    $region11: #{forward.1} parent=1 // pred_check_branch
      %28 = sbr.rel (0) target = $region13
    $region12: #{forward.1} parent=1 // pred_region
      _
    $region13: #{forward.1} parent=1 // pred_fallthru
      _
    // Predicated region
    $region14: #{forward.1} parent=1 // pred_check
      _
    $region15: #{forward.1} parent=1 // pred_check_branch
      %30 = sbr.rel (0) target = $region17
    $region16: #{forward.1} parent=1 // pred_region
      %s32 = ssub.s32 128, 128
      %33 = vsyncadd [#allocation6], %s32
      %s34 = sshll.u32 [#allocation5], 4
      %s35 = int_to_ptr.vmem [resolvable:$true] %s34
      %40 = dma.hbm_to_vmem [thread:$0]  %s3, 128, %s35, [#allocation6], 64, 64, 4
    $region17: #{forward.1} parent=1 // pred_fallthru
      _
    // Predicated region
    $region18: #{forward.1} parent=1 // pred_check
      _
    $region19: #{forward.1} parent=1 // pred_check_branch
      %42 = sbr.rel (0) target = $region21
    $region20: #{forward.1} parent=1 // pred_region
      %s44 = ssub.s32 16, 16
      %45 = vsyncadd [#allocation6], %s44
      %s47 = sshll.u32 [#allocation7], 4
      %s48 = int_to_ptr.vmem [resolvable:$true] %s47
      %50 = dma.hbm_to_vmem [thread:$0]  %s4, 16, %s48, [#allocation6]
    $region21: #{forward.1} parent=1 // pred_fallthru
      _
    // Predicated region
    $region22: #{forward.1} parent=1 // pred_check
      _
    $region23: #{forward.1} parent=1 // pred_check_branch
      %52 = sbr.rel (0) target = $region25
    $region24: #{forward.1} parent=1 // pred_region
      %53 = dma.done [#allocation3], 256
    $region25: #{forward.1} parent=1 // pred_fallthru
      _
    // Predicated region
    $region26: #{forward.1} parent=1 // pred_check
      _
    $region27: #{forward.1} parent=1 // pred_check_branch
      %55 = sbr.rel (0) target = $region29
    $region28: #{forward.1} parent=1 // pred_region
      %56 = dma.done [#allocation6], 128
    $region29: #{forward.1} parent=1 // pred_fallthru
      _
    // Predicated region
    $region30: #{forward.1} parent=1 // pred_check
      _
    $region31: #{forward.1} parent=1 // pred_check_branch
      %58 = sbr.rel (0) target = $region33
    $region32: #{forward.1} parent=1 // pred_region
      %59 = dma.done [#allocation6], 16
    $region33: #{forward.1} parent=1 // pred_fallthru
      _
    %v61 = vld [vmem:[%s0] sm:$0xff]
    %v62 = vld [vmem:[%s0 + $0x8] sm:$0xff]
    %v63 = vpack.c.bf16 %v62, %v61
    %v64 = vld [vmem:[%s2] sm:$0xf]
    %v65 = vld [vmem:[%s2 + $0x4] sm:$0xf]
    %v66 = vld [vmem:[%s2 + $0x8] sm:$0xf]
    %v67 = vld [vmem:[%s2 + $0xc] sm:$0xf]
    %v68 = vld [vmem:[#allocation2] sm:$0xff]
    %v69 = vld [vmem:[#allocation2 + $0x8] sm:$0xff]
    %v70 = vpack.c.bf16 %v69, %v68
    %v71 = vld [vmem:[#allocation5] sm:$0xf]
    %v72 = vld [vmem:[#allocation5 + $0x4] sm:$0xf]
    %v75 = vunpack.c.l.b16 %v71
    %v76 = vunpack.c.l.b16 %v72
    %v77 = vpack.c.b16 %v76, %v75
    %vm79 = vcmask 130048
    %v81 = vsel %vm79, %v70, 0
    %83 = vmatprep.subr.bf16.mxu0 0
    %84 = vmatpush1.bf16.msra.mxu0 %v77
    %85 = vmatprep.subr.bf16.mxu0 0
    %86 = vmatpush1.bf16.msra.mxu0 0
    %87 = vmatprep.subr.bf16.mxu0 0
    %88 = vmatpush1.bf16.msra.mxu0 0
    %89 = vmatprep.subr.bf16.mxu0 0
    %90 = vmatpush1.bf16.msra.mxu0 0
    %91 = vmatprep.subr.bf16.mxu0 0
    %92 = vmatpush1.bf16.msra.mxu0 0
    %93 = vmatprep.subr.bf16.mxu0 0
    %94 = vmatpush1.bf16.msra.mxu0 0
    %95 = vmatprep.subr.bf16.mxu0 0
    %96 = vmatpush1.bf16.msra.mxu0 0
    %97 = vmatprep.subr.bf16.mxu0 0
    %98 = vmatpush1.bf16.msra.mxu0 0
    %99 = vmatprep.subr.bf16.mxu0 0
    %100 = vmatpush1.bf16.msra.mxu0 0
    %101 = vmatprep.subr.bf16.mxu0 0
    %102 = vmatpush1.bf16.msra.mxu0 0
    %103 = vmatprep.subr.bf16.mxu0 0
    %104 = vmatpush1.bf16.msra.mxu0 0
    %105 = vmatprep.subr.bf16.mxu0 0
    %106 = vmatpush1.bf16.msra.mxu0 0
    %107 = vmatprep.subr.bf16.mxu0 0
    %108 = vmatpush1.bf16.msra.mxu0 0
    %109 = vmatprep.subr.bf16.mxu0 0
    %110 = vmatpush1.bf16.msra.mxu0 0
    %111 = vmatprep.subr.bf16.mxu0 0
    %112 = vmatpush1.bf16.msra.mxu0 0
    %113 = vmatprep.subr.bf16.mxu0 0
    %114 = vmatpush1.bf16.msra.mxu0 0
    %115 = vmatprep.mubr.bf16.mxu0 0
    %116 = vmatmul.mubr.bf16.gmra.mrb[0].mxu0 %v81
    %v117 = vpop.f32.mrb[0].mxu0
    %v118 = vadd.f32 0.0, %v117
    %v119 = vpop.f32.mrb[0].mxu0
    %v120 = vpop.f32.mrb[0].mxu0
    %v121 = vadd.f32 0.0, %v120
    %v122 = vpop.f32.mrb[0].mxu0
    %123 = vdwg.mxu0
    %v128 = vunpack.c.l.b16 %v64
    %v129 = vunpack.c.l.b16 %v65
    %v130 = vunpack.c.l.b16 %v66
    %v131 = vunpack.c.l.b16 %v67
    %v132 = vpack.c.b16 %v129, %v128
    %v133 = vpack.c.b16 %v131, %v130
    %vm136 = vcmask 261120
    %v138 = vsel %vm136, %v63, 0
    %140 = vmatprep.subr.bf16.mxu0 0
    %141 = vmatpush1.bf16.msra.mxu0 %v132
    %142 = vmatprep.subr.bf16.mxu0 0
    %143 = vmatpush1.bf16.msra.mxu0 %v133
    %144 = vmatprep.subr.bf16.mxu0 0
    %145 = vmatpush1.bf16.msra.mxu0 0
    %146 = vmatprep.subr.bf16.mxu0 0
    %147 = vmatpush1.bf16.msra.mxu0 0
    %148 = vmatprep.subr.bf16.mxu0 0
    %149 = vmatpush1.bf16.msra.mxu0 0
    %150 = vmatprep.subr.bf16.mxu0 0
    %151 = vmatpush1.bf16.msra.mxu0 0
    %152 = vmatprep.subr.bf16.mxu0 0
    %153 = vmatpush1.bf16.msra.mxu0 0
    %154 = vmatprep.subr.bf16.mxu0 0
    %155 = vmatpush1.bf16.msra.mxu0 0
    %156 = vmatprep.subr.bf16.mxu0 0
    %157 = vmatpush1.bf16.msra.mxu0 0
    %158 = vmatprep.subr.bf16.mxu0 0
    %159 = vmatpush1.bf16.msra.mxu0 0
    %160 = vmatprep.subr.bf16.mxu0 0
    %161 = vmatpush1.bf16.msra.mxu0 0
    %162 = vmatprep.subr.bf16.mxu0 0
    %163 = vmatpush1.bf16.msra.mxu0 0
    %164 = vmatprep.subr.bf16.mxu0 0
    %165 = vmatpush1.bf16.msra.mxu0 0
    %166 = vmatprep.subr.bf16.mxu0 0
    %167 = vmatpush1.bf16.msra.mxu0 0
    %168 = vmatprep.subr.bf16.mxu0 0
    %169 = vmatpush1.bf16.msra.mxu0 0
    %170 = vmatprep.subr.bf16.mxu0 0
    %171 = vmatpush1.bf16.msra.mxu0 0
    %172 = vmatprep.mubr.bf16.mxu0 0
    %173 = vmatmul.mubr.bf16.gmra.mrb[0].mxu0 %v138
    %v174 = vpop.f32.mrb[0].mxu0
    %v175 = vadd.f32 %v118, %v174
    %v176 = vpop.f32.mrb[0].mxu0
    %v177 = vpop.f32.mrb[0].mxu0
    %v178 = vadd.f32 %v121, %v177
    %v179 = vpop.f32.mrb[0].mxu0
    %180 = vdwg.mxu0
    %v181 = vld [vmem:[#allocation7] sm:$0x1]
    %v183 = vlaneseq
    %v184 = vshrl.u32 %v183, 7
    %v185 = vsub.s32 0, %v184
    %v186 = vrot.slane %v181, %v185
    %v188 = vadd.f32 %v175, %v186
    %v189 = vadd.f32 %v178, %v186
    %vm190 = vcmask 80896
    %191 = vst.msk [vmem:[#allocation8] sm:$0xff] %vm190, %v188
    %192 = vst.msk [vmem:[#allocation8 + $0x8] sm:$0xff] %vm190, %v189
    // Predicated region
    $region34: #{forward.1} parent=1 // pred_check
      _
    $region35: #{forward.1} parent=1 // pred_check_branch
      %194 = sbr.rel (0) target = $region37
    $region36: #{forward.1} parent=1 // pred_region
      %s196 = ssub.s32 256, 32
      %197 = vsyncadd [#allocation4], %s196
      %s198 = sshll.u32 [#allocation8], 4
      %s199 = int_to_ptr.vmem [resolvable:$true] %s198
      %204 = dma.vmem_to_hbm [thread:$0]  %s199, 32, %s5, [#allocation4], 32, 32, 2
    $region37: #{forward.1} parent=1 // pred_fallthru
      _
    // Predicated region
    $region38: #{forward.1} parent=1 // pred_check
      _
    $region39: #{forward.1} parent=1 // pred_check_branch
      %206 = sbr.rel (0) target = $region41
    $region40: #{forward.1} parent=1 // pred_region
      %207 = dma.done [#allocation4], 256
    $region41: #{forward.1} parent=1 // pred_fallthru
      _
    %208 = vsyncpa [#allocation3], 1
    %209 = vsyncpa [#allocation6], 1
    %210 = vsyncpa [#allocation4], 1

</llo_original>
